<compile_context>
chip_gen: v6e
topology: v6e:2x2x1
jax: 0.10.0
libtpu: 0.0.40
codegen_flags: <defaults>
</compile_context>

<pallas_src>
import functools

import jax
import jax.numpy as jnp
from jax import lax
from jax.experimental import pallas as pl
from jax.experimental.pallas import tpu as pltpu

EPS = 1e-5  # PyTorch InstanceNorm2d default (affine=False, biased variance)


def _instance_norm(a, inv_hw):
    # a: (C, HW) f32 -- per-channel norm over the flattened spatial axis.
    # Single pass: E[x^2] - E[x]^2 in f32 (feedback item; numerics kept in f32).
    s1 = jnp.sum(a, axis=1, keepdims=True)
    s2 = jnp.sum(a * a, axis=1, keepdims=True)
    mean = s1 * inv_hw
    var = jnp.maximum(s2 * inv_hw - mean * mean, 0.0)
    return (a - mean) * lax.rsqrt(var + EPS)


def _conv3x3_flat(a, w_mat, b, *, width, w0_mask, wl_mask):
    """3x3 conv with reflection padding 1 on flat (C, H*W) activations.

    a      : (C, HW) f32, spatial flattened row-major over (H, W)
    w_mat  : (C_out, 9*C_in), tap-major ((kh*3 + kw)*C_in + ci)
    b      : (C_out, 1)
    masks  : (C, HW) bool, True where column == 0 / column == W-1
    """
    C, HW = a.shape
    W = width

    def prev_lane(r):   # out[p] = r[p-1]   (p = 0 lane is junk, never selected)
        return jnp.concatenate([r[:, :1], r[:, :HW - 1]], axis=1)

    def next_lane(r):   # out[p] = r[p+1]   (p = HW-1 lane is junk, never selected)
        return jnp.concatenate([r[:, 1:], r[:, HW - 1:]], axis=1)

    def col_taps(r):
        p, n = prev_lane(r), next_lane(r)
        return (jnp.where(w0_mask, n, p),    # dw = -1 (reflect col 0   -> 1)
                r,                           # dw =  0
                jnp.where(wl_mask, p, n))    # dw = +1 (reflect col W-1 -> W-2)

    # Row (dh) shifts: full-row moves in flat space; reflection folded into the
    # slice bounds (row -1 -> row 1, row H -> row H-2).
    row_m1 = jnp.concatenate([a[:, W:2 * W], a[:, :HW - W]], axis=1)        # dh = -1
    row_p1 = jnp.concatenate([a[:, W:], a[:, HW - 2 * W:HW - W]], axis=1)   # dh = +1

    taps = []
    for r in (row_m1, a, row_p1):            # kh = 0, 1, 2
        taps.extend(col_taps(r))             # kw = 0, 1, 2
    patches = jnp.concatenate(taps, axis=0)  # (9*C, HW) im2col, lane-dense

    out = jnp.dot(w_mat, patches, preferred_element_type=jnp.float32)
    return out + b


def residual_block_kernel(x_ref, wcol_ref, w1_ref, b1_ref, w2_ref, b2_ref,
                          o_ref, *, width):
    # x_ref / o_ref: (1, C, H*W) block -- one batch element, spatial in lanes.
    C, HW = x_ref.shape[1], x_ref.shape[2]
    x = x_ref[0].astype(jnp.float32)                        # (C, HW)

    # Border-column masks, built once (hoisted) from the lane->column index map.
    wcol = jnp.broadcast_to(wcol_ref[...], (C, HW))
    w0_mask = wcol == 0
    wl_mask = wcol == (width - 1)

    inv_hw = 1.0 / float(HW)
    conv = functools.partial(_conv3x3_flat, width=width,
                             w0_mask=w0_mask, wl_mask=wl_mask)

    h = conv(x, w1_ref[...], b1_ref[...])
    h = jnp.maximum(_instance_norm(h, inv_hw), 0.0)
    h = conv(h, w2_ref[...], b2_ref[...])
    h = _instance_norm(h, inv_hw)

    o_ref[0] = (x + h).astype(o_ref.dtype)


def residual_block(x_nchw, w1_oihw, b1, w2_oihw, b2):
    """x: (B, C, H, W); w*: (C, C, 3, 3) OIHW (PyTorch layout); b*: (C,)."""
    B, C, H, W = x_nchw.shape
    HW = H * W
    assert H >= 2 and W >= 2, "reflection pad of 1 needs H, W >= 2"

    # Contiguous reshapes only -- no NCHW<->NHWC transposes in the wrapper.
    x_flat = x_nchw.reshape(B, C, HW)
    # lane index -> column index map (drives the reflected-border selects)
    wcol = (jnp.arange(HW, dtype=jnp.int32) % W).reshape(1, HW)
    # OIHW -> (C_out, 9*C_in), tap-major / input-channel-minor
    w1m = jnp.transpose(w1_oihw, (0, 2, 3, 1)).reshape(C, 9 * C)
    w2m = jnp.transpose(w2_oihw, (0, 2, 3, 1)).reshape(C, 9 * C)
    b1c = b1.reshape(C, 1).astype(jnp.float32)
    b2c = b2.reshape(C, 1).astype(jnp.float32)

    out = pl.pallas_call(
        functools.partial(residual_block_kernel, width=W),
        out_shape=jax.ShapeDtypeStruct((B, C, HW), x_nchw.dtype),
        grid_spec=pltpu.PrefetchScalarGridSpec(
            num_scalar_prefetch=0,
            grid=(B,),
            in_specs=[
                pl.BlockSpec((1, C, HW), lambda b: (b, 0, 0)),
                pl.BlockSpec((1, HW), lambda b: (0, 0)),
                pl.BlockSpec((C, 9 * C), lambda b: (0, 0)),
                pl.BlockSpec((C, 1), lambda b: (0, 0)),
                pl.BlockSpec((C, 9 * C), lambda b: (0, 0)),
                pl.BlockSpec((C, 1), lambda b: (0, 0)),
            ],
            out_specs=pl.BlockSpec((1, C, HW), lambda b: (b, 0, 0)),
        ),
        compiler_params=pltpu.CompilerParams(
            dimension_semantics=("parallel",),
            vmem_limit_bytes=32 * 1024 * 1024),
    )(x_flat, wcol, w1m, b1c, w2m, b2c)

    return out.reshape(B, C, H, W)


def residual_block_ref(x, w1, b1, w2, b2):
    # pure-JAX reference (NCHW conv, OIHW weights, PyTorch semantics)
    xf = x.astype(jnp.float32)

    def conv(a, w, b):
        a = jnp.pad(a, ((0, 0), (0, 0), (1, 1), (1, 1)), mode="reflect")
        y = lax.conv_general_dilated(
            a, w.astype(jnp.float32), window_strides=(1, 1), padding="VALID",
            dimension_numbers=("NCHW", "OIHW", "NCHW"))
        return y + b.reshape(1, -1, 1, 1)

    def inorm(a):
        mean = jnp.mean(a, axis=(2, 3), keepdims=True)
        var = jnp.mean((a - mean) ** 2, axis=(2, 3), keepdims=True)
        return (a - mean) * lax.rsqrt(var + EPS)

    h = jnp.maximum(inorm(conv(xf, w1, b1)), 0.0)
    h = inorm(conv(h, w2, b2))
    return (xf + h).astype(x.dtype)


if __name__ == "__main__":
    B, C, H, W = 2, 4, 16, 16
    key = jax.random.PRNGKey(0)
    kx, kw1, kb1, kw2, kb2 = jax.random.split(key, 5)

    x = jax.random.normal(kx, (B, C, H, W), jnp.float32)
    # Conv2d(C, C, 3) parameters in PyTorch OIHW layout, default-uniform init.
    fan_in = C * 3 * 3
    bound = 1.0 / (fan_in ** 0.5)
    w1 = jax.random.uniform(kw1, (C, C, 3, 3), jnp.float32, -bound, bound)
    b1 = jax.random.uniform(kb1, (C,), jnp.float32, -bound, bound)
    w2 = jax.random.uniform(kw2, (C, C, 3, 3), jnp.float32, -bound, bound)
    b2 = jax.random.uniform(kb2, (C,), jnp.float32, -bound, bound)

    out = jax.block_until_ready(residual_block(x, w1, b1, w2, b2))
    ref = jax.block_until_ready(residual_block_ref(x, w1, b1, w2, b2))
    assert out.shape == (B, C, H, W)
    assert jnp.allclose(out, ref, atol=1e-4, rtol=1e-4), \
        float(jnp.max(jnp.abs(out - ref)))
    print("KERNEL_OK")
</pallas_src>

<mosaic_0001>
module attributes {stable_mosaic.version = 11 : i64} {
  func.func @residual_block_kernel(%arg0: i32, %arg1: memref<1x4x256xf32, #tpu.memory_space<vmem>>, %arg2: memref<1x256xi32, #tpu.memory_space<vmem>>, %arg3: memref<4x36xf32, #tpu.memory_space<vmem>>, %arg4: memref<4x1xf32, #tpu.memory_space<vmem>>, %arg5: memref<4x36xf32, #tpu.memory_space<vmem>>, %arg6: memref<4x1xf32, #tpu.memory_space<vmem>>, %arg7: memref<1x4x256xf32, #tpu.memory_space<vmem>>) attributes {dimension_semantics = [#tpu.dimension_semantics<parallel>], iteration_bounds = array<i64: 2>, scalar_prefetch = 0 : i64, scratch_operands = 0 : i64, tpu.core_type = #tpu.core_type<tc>, window_params = [{transform_indices = @transform_0, window_bounds = array<i64: 1, 4, 256>}, {pipeline_mode = #tpu.pipeline_mode<synchronous>, transform_indices = @transform_1, window_bounds = array<i64: 1, 256>}, {pipeline_mode = #tpu.pipeline_mode<synchronous>, transform_indices = @transform_2, window_bounds = array<i64: 4, 36>}, {pipeline_mode = #tpu.pipeline_mode<synchronous>, transform_indices = @transform_3, window_bounds = array<i64: 4, 1>}, {pipeline_mode = #tpu.pipeline_mode<synchronous>, transform_indices = @transform_4, window_bounds = array<i64: 4, 36>}, {pipeline_mode = #tpu.pipeline_mode<synchronous>, transform_indices = @transform_5, window_bounds = array<i64: 4, 1>}, {transform_indices = @transform_6, window_bounds = array<i64: 1, 4, 256>}]} {
    %c0 = arith.constant 0 : index
    %c0_0 = arith.constant 0 : index
    %c0_1 = arith.constant 0 : index
    %0 = vector.load %arg1[%c0, %c0_0, %c0_1] : memref<1x4x256xf32, #tpu.memory_space<vmem>>, vector<1x4x256xf32>
    %1 = vector.shape_cast %0 : vector<1x4x256xf32> to vector<4x256xf32>
    %c0_2 = arith.constant 0 : index
    %c0_3 = arith.constant 0 : index
    %2 = vector.load %arg2[%c0_2, %c0_3] : memref<1x256xi32, #tpu.memory_space<vmem>>, vector<1x256xi32>
    %3 = vector.shape_cast %2 : vector<1x256xi32> to vector<1x256xi32>
    %4 = vector.broadcast %3 : vector<1x256xi32> to vector<4x256xi32>
    %c0_i32 = arith.constant 0 : i32
    %5 = vector.broadcast %c0_i32 : i32 to vector<4x256xi32>
    %6 = arith.cmpi eq, %4, %5 : vector<4x256xi32>
    %c15_i32 = arith.constant 15 : i32
    %7 = vector.broadcast %c15_i32 : i32 to vector<4x256xi32>
    %8 = arith.cmpi eq, %4, %7 : vector<4x256xi32>
    %c0_4 = arith.constant 0 : index
    %c0_5 = arith.constant 0 : index
    %9 = vector.load %arg3[%c0_4, %c0_5] : memref<4x36xf32, #tpu.memory_space<vmem>>, vector<4x36xf32>
    %c0_6 = arith.constant 0 : index
    %c0_7 = arith.constant 0 : index
    %10 = vector.load %arg4[%c0_6, %c0_7] : memref<4x1xf32, #tpu.memory_space<vmem>>, vector<4x1xf32>
    %11 = vector.extract_strided_slice %1 {offsets = [0, 16], sizes = [4, 16], strides = [1, 1]} : vector<4x256xf32> to vector<4x16xf32>
    %12 = vector.extract_strided_slice %1 {offsets = [0, 0], sizes = [4, 240], strides = [1, 1]} : vector<4x256xf32> to vector<4x240xf32>
    %13 = tpu.concatenate %11, %12 in 1 : vector<4x16xf32>, vector<4x240xf32> -> vector<4x256xf32>
    %14 = vector.extract_strided_slice %1 {offsets = [0, 16], sizes = [4, 240], strides = [1, 1]} : vector<4x256xf32> to vector<4x240xf32>
    %15 = vector.extract_strided_slice %1 {offsets = [0, 224], sizes = [4, 16], strides = [1, 1]} : vector<4x256xf32> to vector<4x16xf32>
    %16 = tpu.concatenate %14, %15 in 1 : vector<4x240xf32>, vector<4x16xf32> -> vector<4x256xf32>
    %17 = vector.extract_strided_slice %13 {offsets = [0, 0], sizes = [4, 1], strides = [1, 1]} : vector<4x256xf32> to vector<4x1xf32>
    %18 = vector.extract_strided_slice %13 {offsets = [0, 0], sizes = [4, 255], strides = [1, 1]} : vector<4x256xf32> to vector<4x255xf32>
    %19 = tpu.concatenate %17, %18 in 1 : vector<4x1xf32>, vector<4x255xf32> -> vector<4x256xf32>
    %20 = vector.extract_strided_slice %13 {offsets = [0, 1], sizes = [4, 255], strides = [1, 1]} : vector<4x256xf32> to vector<4x255xf32>
    %21 = vector.extract_strided_slice %13 {offsets = [0, 255], sizes = [4, 1], strides = [1, 1]} : vector<4x256xf32> to vector<4x1xf32>
    %22 = tpu.concatenate %20, %21 in 1 : vector<4x255xf32>, vector<4x1xf32> -> vector<4x256xf32>
    %23 = arith.select %6, %22, %19 : vector<4x256xi1>, vector<4x256xf32>
    %24 = arith.select %8, %19, %22 : vector<4x256xi1>, vector<4x256xf32>
    %25 = vector.extract_strided_slice %1 {offsets = [0, 0], sizes = [4, 1], strides = [1, 1]} : vector<4x256xf32> to vector<4x1xf32>
    %26 = vector.extract_strided_slice %1 {offsets = [0, 0], sizes = [4, 255], strides = [1, 1]} : vector<4x256xf32> to vector<4x255xf32>
    %27 = tpu.concatenate %25, %26 in 1 : vector<4x1xf32>, vector<4x255xf32> -> vector<4x256xf32>
    %28 = vector.extract_strided_slice %1 {offsets = [0, 1], sizes = [4, 255], strides = [1, 1]} : vector<4x256xf32> to vector<4x255xf32>
    %29 = vector.extract_strided_slice %1 {offsets = [0, 255], sizes = [4, 1], strides = [1, 1]} : vector<4x256xf32> to vector<4x1xf32>
    %30 = tpu.concatenate %28, %29 in 1 : vector<4x255xf32>, vector<4x1xf32> -> vector<4x256xf32>
    %31 = arith.select %6, %30, %27 : vector<4x256xi1>, vector<4x256xf32>
    %32 = arith.select %8, %27, %30 : vector<4x256xi1>, vector<4x256xf32>
    %33 = vector.extract_strided_slice %16 {offsets = [0, 0], sizes = [4, 1], strides = [1, 1]} : vector<4x256xf32> to vector<4x1xf32>
    %34 = vector.extract_strided_slice %16 {offsets = [0, 0], sizes = [4, 255], strides = [1, 1]} : vector<4x256xf32> to vector<4x255xf32>
    %35 = tpu.concatenate %33, %34 in 1 : vector<4x1xf32>, vector<4x255xf32> -> vector<4x256xf32>
    %36 = vector.extract_strided_slice %16 {offsets = [0, 1], sizes = [4, 255], strides = [1, 1]} : vector<4x256xf32> to vector<4x255xf32>
    %37 = vector.extract_strided_slice %16 {offsets = [0, 255], sizes = [4, 1], strides = [1, 1]} : vector<4x256xf32> to vector<4x1xf32>
    %38 = tpu.concatenate %36, %37 in 1 : vector<4x255xf32>, vector<4x1xf32> -> vector<4x256xf32>
    %39 = arith.select %6, %38, %35 : vector<4x256xi1>, vector<4x256xf32>
    %40 = arith.select %8, %35, %38 : vector<4x256xi1>, vector<4x256xf32>
    %41 = tpu.concatenate %23, %13, %24, %31, %1, %32, %39, %16, %40 in 0 : vector<4x256xf32>, vector<4x256xf32>, vector<4x256xf32>, vector<4x256xf32>, vector<4x256xf32>, vector<4x256xf32>, vector<4x256xf32>, vector<4x256xf32>, vector<4x256xf32> -> vector<36x256xf32>
    %cst = arith.constant dense<0.000000e+00> : vector<4x256xf32>
    %42 = tpu.matmul %9, %41, %cst {dimension_numbers = #tpu.dot_dimension_numbers<[1], [0], [0], [1], [0, 0, 1, 1], [], []>} : vector<4x36xf32>, vector<36x256xf32>, vector<4x256xf32> -> vector<4x256xf32>
    %43 = vector.broadcast %10 : vector<4x1xf32> to vector<4x256xf32>
    %44 = arith.addf %42, %43 : vector<4x256xf32>
    %cst_8 = arith.constant dense<0.000000e+00> : vector<4xf32>
    %45 = vector.multi_reduction <add>, %44, %cst_8 [1] : vector<4x256xf32> to vector<4xf32>
    %46 = vector.shape_cast %45 : vector<4xf32> to vector<4x1xf32>
    %47 = arith.mulf %44, %44 : vector<4x256xf32>
    %cst_9 = arith.constant dense<0.000000e+00> : vector<4xf32>
    %48 = vector.multi_reduction <add>, %47, %cst_9 [1] : vector<4x256xf32> to vector<4xf32>
    %49 = vector.shape_cast %48 : vector<4xf32> to vector<4x1xf32>
    %cst_10 = arith.constant 3.906250e-03 : f32
    %50 = vector.broadcast %cst_10 : f32 to vector<4x1xf32>
    %51 = arith.mulf %46, %50 : vector<4x1xf32>
    %cst_11 = arith.constant 3.906250e-03 : f32
    %52 = vector.broadcast %cst_11 : f32 to vector<4x1xf32>
    %53 = arith.mulf %49, %52 : vector<4x1xf32>
    %54 = arith.mulf %51, %51 : vector<4x1xf32>
    %55 = arith.subf %53, %54 : vector<4x1xf32>
    %cst_12 = arith.constant 0.000000e+00 : f32
    %56 = vector.broadcast %cst_12 : f32 to vector<4x1xf32>
    %57 = arith.maximumf %55, %56 : vector<4x1xf32>
    %58 = vector.broadcast %51 : vector<4x1xf32> to vector<4x256xf32>
    %59 = arith.subf %44, %58 : vector<4x256xf32>
    %cst_13 = arith.constant 9.99999974E-6 : f32
    %60 = vector.broadcast %cst_13 : f32 to vector<4x1xf32>
    %61 = arith.addf %57, %60 : vector<4x1xf32>
    %62 = math.rsqrt %61 : vector<4x1xf32>
    %63 = vector.broadcast %62 : vector<4x1xf32> to vector<4x256xf32>
    %64 = arith.mulf %59, %63 : vector<4x256xf32>
    %cst_14 = arith.constant 0.000000e+00 : f32
    %65 = vector.broadcast %cst_14 : f32 to vector<4x256xf32>
    %66 = arith.maximumf %64, %65 : vector<4x256xf32>
    %c0_15 = arith.constant 0 : index
    %c0_16 = arith.constant 0 : index
    %67 = vector.load %arg5[%c0_15, %c0_16] : memref<4x36xf32, #tpu.memory_space<vmem>>, vector<4x36xf32>
    %c0_17 = arith.constant 0 : index
    %c0_18 = arith.constant 0 : index
    %68 = vector.load %arg6[%c0_17, %c0_18] : memref<4x1xf32, #tpu.memory_space<vmem>>, vector<4x1xf32>
    %69 = vector.extract_strided_slice %66 {offsets = [0, 16], sizes = [4, 16], strides = [1, 1]} : vector<4x256xf32> to vector<4x16xf32>
    %70 = vector.extract_strided_slice %66 {offsets = [0, 0], sizes = [4, 240], strides = [1, 1]} : vector<4x256xf32> to vector<4x240xf32>
    %71 = tpu.concatenate %69, %70 in 1 : vector<4x16xf32>, vector<4x240xf32> -> vector<4x256xf32>
    %72 = vector.extract_strided_slice %66 {offsets = [0, 16], sizes = [4, 240], strides = [1, 1]} : vector<4x256xf32> to vector<4x240xf32>
    %73 = vector.extract_strided_slice %66 {offsets = [0, 224], sizes = [4, 16], strides = [1, 1]} : vector<4x256xf32> to vector<4x16xf32>
    %74 = tpu.concatenate %72, %73 in 1 : vector<4x240xf32>, vector<4x16xf32> -> vector<4x256xf32>
    %75 = vector.extract_strided_slice %71 {offsets = [0, 0], sizes = [4, 1], strides = [1, 1]} : vector<4x256xf32> to vector<4x1xf32>
    %76 = vector.extract_strided_slice %71 {offsets = [0, 0], sizes = [4, 255], strides = [1, 1]} : vector<4x256xf32> to vector<4x255xf32>
    %77 = tpu.concatenate %75, %76 in 1 : vector<4x1xf32>, vector<4x255xf32> -> vector<4x256xf32>
    %78 = vector.extract_strided_slice %71 {offsets = [0, 1], sizes = [4, 255], strides = [1, 1]} : vector<4x256xf32> to vector<4x255xf32>
    %79 = vector.extract_strided_slice %71 {offsets = [0, 255], sizes = [4, 1], strides = [1, 1]} : vector<4x256xf32> to vector<4x1xf32>
    %80 = tpu.concatenate %78, %79 in 1 : vector<4x255xf32>, vector<4x1xf32> -> vector<4x256xf32>
    %81 = arith.select %6, %80, %77 : vector<4x256xi1>, vector<4x256xf32>
    %82 = arith.select %8, %77, %80 : vector<4x256xi1>, vector<4x256xf32>
    %83 = vector.extract_strided_slice %66 {offsets = [0, 0], sizes = [4, 1], strides = [1, 1]} : vector<4x256xf32> to vector<4x1xf32>
    %84 = vector.extract_strided_slice %66 {offsets = [0, 0], sizes = [4, 255], strides = [1, 1]} : vector<4x256xf32> to vector<4x255xf32>
    %85 = tpu.concatenate %83, %84 in 1 : vector<4x1xf32>, vector<4x255xf32> -> vector<4x256xf32>
    %86 = vector.extract_strided_slice %66 {offsets = [0, 1], sizes = [4, 255], strides = [1, 1]} : vector<4x256xf32> to vector<4x255xf32>
    %87 = vector.extract_strided_slice %66 {offsets = [0, 255], sizes = [4, 1], strides = [1, 1]} : vector<4x256xf32> to vector<4x1xf32>
    %88 = tpu.concatenate %86, %87 in 1 : vector<4x255xf32>, vector<4x1xf32> -> vector<4x256xf32>
    %89 = arith.select %6, %88, %85 : vector<4x256xi1>, vector<4x256xf32>
    %90 = arith.select %8, %85, %88 : vector<4x256xi1>, vector<4x256xf32>
    %91 = vector.extract_strided_slice %74 {offsets = [0, 0], sizes = [4, 1], strides = [1, 1]} : vector<4x256xf32> to vector<4x1xf32>
    %92 = vector.extract_strided_slice %74 {offsets = [0, 0], sizes = [4, 255], strides = [1, 1]} : vector<4x256xf32> to vector<4x255xf32>
    %93 = tpu.concatenate %91, %92 in 1 : vector<4x1xf32>, vector<4x255xf32> -> vector<4x256xf32>
    %94 = vector.extract_strided_slice %74 {offsets = [0, 1], sizes = [4, 255], strides = [1, 1]} : vector<4x256xf32> to vector<4x255xf32>
    %95 = vector.extract_strided_slice %74 {offsets = [0, 255], sizes = [4, 1], strides = [1, 1]} : vector<4x256xf32> to vector<4x1xf32>
    %96 = tpu.concatenate %94, %95 in 1 : vector<4x255xf32>, vector<4x1xf32> -> vector<4x256xf32>
    %97 = arith.select %6, %96, %93 : vector<4x256xi1>, vector<4x256xf32>
    %98 = arith.select %8, %93, %96 : vector<4x256xi1>, vector<4x256xf32>
    %99 = tpu.concatenate %81, %71, %82, %89, %66, %90, %97, %74, %98 in 0 : vector<4x256xf32>, vector<4x256xf32>, vector<4x256xf32>, vector<4x256xf32>, vector<4x256xf32>, vector<4x256xf32>, vector<4x256xf32>, vector<4x256xf32>, vector<4x256xf32> -> vector<36x256xf32>
    %cst_19 = arith.constant dense<0.000000e+00> : vector<4x256xf32>
    %100 = tpu.matmul %67, %99, %cst_19 {dimension_numbers = #tpu.dot_dimension_numbers<[1], [0], [0], [1], [0, 0, 1, 1], [], []>} : vector<4x36xf32>, vector<36x256xf32>, vector<4x256xf32> -> vector<4x256xf32>
    %101 = vector.broadcast %68 : vector<4x1xf32> to vector<4x256xf32>
    %102 = arith.addf %100, %101 : vector<4x256xf32>
    %cst_20 = arith.constant dense<0.000000e+00> : vector<4xf32>
    %103 = vector.multi_reduction <add>, %102, %cst_20 [1] : vector<4x256xf32> to vector<4xf32>
    %104 = vector.shape_cast %103 : vector<4xf32> to vector<4x1xf32>
    %105 = arith.mulf %102, %102 : vector<4x256xf32>
    %cst_21 = arith.constant dense<0.000000e+00> : vector<4xf32>
    %106 = vector.multi_reduction <add>, %105, %cst_21 [1] : vector<4x256xf32> to vector<4xf32>
    %107 = vector.shape_cast %106 : vector<4xf32> to vector<4x1xf32>
    %cst_22 = arith.constant 3.906250e-03 : f32
    %108 = vector.broadcast %cst_22 : f32 to vector<4x1xf32>
    %109 = arith.mulf %104, %108 : vector<4x1xf32>
    %cst_23 = arith.constant 3.906250e-03 : f32
    %110 = vector.broadcast %cst_23 : f32 to vector<4x1xf32>
    %111 = arith.mulf %107, %110 : vector<4x1xf32>
    %112 = arith.mulf %109, %109 : vector<4x1xf32>
    %113 = arith.subf %111, %112 : vector<4x1xf32>
    %cst_24 = arith.constant 0.000000e+00 : f32
    %114 = vector.broadcast %cst_24 : f32 to vector<4x1xf32>
    %115 = arith.maximumf %113, %114 : vector<4x1xf32>
    %116 = vector.broadcast %109 : vector<4x1xf32> to vector<4x256xf32>
    %117 = arith.subf %102, %116 : vector<4x256xf32>
    %cst_25 = arith.constant 9.99999974E-6 : f32
    %118 = vector.broadcast %cst_25 : f32 to vector<4x1xf32>
    %119 = arith.addf %115, %118 : vector<4x1xf32>
    %120 = math.rsqrt %119 : vector<4x1xf32>
    %121 = vector.broadcast %120 : vector<4x1xf32> to vector<4x256xf32>
    %122 = arith.mulf %117, %121 : vector<4x256xf32>
    %123 = arith.addf %1, %122 : vector<4x256xf32>
    %c0_26 = arith.constant 0 : index
    %c0_27 = arith.constant 0 : index
    %c0_28 = arith.constant 0 : index
    %124 = vector.load %arg7[%c0_26, %c0_27, %c0_28] : memref<1x4x256xf32, #tpu.memory_space<vmem>>, vector<1x4x256xf32>
    %125 = vector.shape_cast %124 : vector<1x4x256xf32> to vector<4x256xf32>
    %126 = vector.shape_cast %123 : vector<4x256xf32> to vector<1x4x256xf32>
    tpu.vector_store %arg7[%c0_26, %c0_27, %c0_28], %126 {strides = array<i32>} : memref<1x4x256xf32, #tpu.memory_space<vmem>>, vector<1x4x256xf32>,
    return
  }
  func.func @transform_0(%arg0: i32) -> (i32, i32, i32) {
    %c0_i32 = arith.constant 0 : i32
    %c0_i32_0 = arith.constant 0 : i32
    %c0_i32_1 = arith.constant 0 : i32
    return %arg0, %c0_i32, %c0_i32_0 : i32, i32, i32
  }
  func.func @transform_1(%arg0: i32) -> (i32, i32) {
    %c0_i32 = arith.constant 0 : i32
    %c0_i32_0 = arith.constant 0 : i32
    %c0_i32_1 = arith.constant 0 : i32
    return %c0_i32, %c0_i32_0 : i32, i32
  }
  func.func @transform_2(%arg0: i32) -> (i32, i32) {
    %c0_i32 = arith.constant 0 : i32
    %c0_i32_0 = arith.constant 0 : i32
    %c0_i32_1 = arith.constant 0 : i32
    return %c0_i32, %c0_i32_0 : i32, i32
  }
  func.func @transform_3(%arg0: i32) -> (i32, i32) {
    %c0_i32 = arith.constant 0 : i32
    %c0_i32_0 = arith.constant 0 : i32
    %c0_i32_1 = arith.constant 0 : i32
    return %c0_i32, %c0_i32_0 : i32, i32
  }
  func.func @transform_4(%arg0: i32) -> (i32, i32) {
    %c0_i32 = arith.constant 0 : i32
    %c0_i32_0 = arith.constant 0 : i32
    %c0_i32_1 = arith.constant 0 : i32
    return %c0_i32, %c0_i32_0 : i32, i32
  }
  func.func @transform_5(%arg0: i32) -> (i32, i32) {
    %c0_i32 = arith.constant 0 : i32
    %c0_i32_0 = arith.constant 0 : i32
    %c0_i32_1 = arith.constant 0 : i32
    return %c0_i32, %c0_i32_0 : i32, i32
  }
  func.func @transform_6(%arg0: i32) -> (i32, i32, i32) {
    %c0_i32 = arith.constant 0 : i32
    %c0_i32_0 = arith.constant 0 : i32
    %c0_i32_1 = arith.constant 0 : i32
    return %arg0, %c0_i32, %c0_i32_0 : i32, i32, i32
  }
}

</mosaic_0001>

<llo_original>
// kernel: tpu_custom_call.1
$region0: #{tpu_custom_call.1}
  #allocation0 [shape = 'u32[]', space=smem, size = 0x4, offset = 0x4, fixed_abs, tag = 'smem constant byte address 0x4 - core index']
  #allocation1 [shape = 'u32[144,128]{1,0:T(1,128)}', space=vmem, size = 0x12000, scoped, tag = 'internal scratch']
  %s0 = inlined_call_operand.hbm [shape: f32[2,4,256], index: 0, kind: input, shape index: {}]
  %s1 = inlined_call_operand.vmem [shape: s32[1,256], index: 1, kind: input, shape index: {}]
  %s2 = inlined_call_operand.vmem [shape: f32[4,36], index: 2, kind: input, shape index: {}]
  %s3 = inlined_call_operand.vmem [shape: f32[4,1], index: 3, kind: input, shape index: {}]
  %s4 = inlined_call_operand.vmem [shape: f32[4,36], index: 4, kind: input, shape index: {}]
  %s5 = inlined_call_operand.vmem [shape: f32[4,1], index: 5, kind: input, shape index: {}]
  %s6 = inlined_call_operand.hbm [shape: f32[2,4,256], index: 6, kind: output, shape index: {}]
  %s7 = sld [smem:[#allocation0]]
  $region61: #{tpu_custom_call.1} parent=0
    _
  %s9 = ssub.s32 1, %s7
  %s10 = scalar_select 0, %s9, %s7
  $region1: #{tpu_custom_call.1} parent=0
    #allocation2 [shape = 'u8[8192]{0}', space=vmem, size = 0x2000, scoped, tag = 'input window, operand 0']
    #allocation3 [shape = 's32[2]{0}', space=sflag, size = 0x8, scoped, tag = 'scoped memory for tpu_custom_call.1']
    #allocation4 [shape = 's32[2]{0}', space=sflag, size = 0x8, scoped, tag = 'scoped memory for tpu_custom_call.1']
    #allocation5 [shape = 'u8[8192]{0}', space=vmem, size = 0x2000, scoped, tag = 'output window, operand 0']
    %11 = vsyncpa [#allocation3], 0
    %s12 = scalar_lea.sflag [#allocation3], 1
    %13 = vsyncpa %s12, 0
    %14 = vsyncpa [#allocation4], 0
    %s15 = scalar_lea.sflag [#allocation4], 1
    %16 = vsyncpa %s15, 0
    loop: start=0, step=1, limit=4
    $region2: #{tpu_custom_call.1} parent=1 // loop_pre_header
      _
    $region3: #{tpu_custom_call.1} parent=1 // loop_header
      %s18 = sphi 0, %s22
      %p19 = scmp.ge.s32.totalorder %s18, 4
      %s28 = sphi 0, %s30
      %s31 = sphi 0, %s28
      %s32 = sphi 0, %s31
      %s48 = sphi 0, %s32
      %s52 = sphi 0, %s52
      %s54 = sphi 0, %s52
      %s55 = sphi 0, %s54
      %s69 = sphi 0, %s55
      %s73 = sphi 0, %s73
      %s75 = sphi 0, %s73
      %s76 = sphi 0, %s75
      %s90 = sphi 0, %s76
      %s94 = sphi 0, %s94
      %s96 = sphi 0, %s94
      %s97 = sphi 0, %s96
      %s111 = sphi 0, %s97
      %s115 = sphi 0, %s115
      %s117 = sphi 0, %s115
      %s118 = sphi 0, %s117
      %s132 = sphi 0, %s118
      %s136 = sphi 0, %s136
      %s138 = sphi 0, %s136
      %s139 = sphi 0, %s138
      %s153 = sphi 0, %s139
      %s159 = sphi 0, %s161
      %s162 = sphi 0, %s159
      %s163 = sphi 0, %s162
      %s179 = sphi 0, %s163
    $region4: #{tpu_custom_call.1} parent=1 // loop_header_branch
      %21 = sbr.rel (%p19) target = $region8
    $region5: #{tpu_custom_call.1} parent=1 // loop_body
      %s23 = ssub.s32 %s18, 1
      %s24 = ssub.s32 %s18, 2
      %s25 = sadd.s32 %s18, 1
      %s26 = ssub.s32 %s18, %s25
      %p27 = scmp.eq.s32.totalorder %s26, 0
      %s29 = sadd.s32 %s28, 1
      %s30 = scalar_select %p27, %s28, %s29
      %p33 = pneg %p27
      %p34 = scmp.eq.s32.totalorder %s18, 1
      %p35 = por %p33, %p34
      %p36 = scmp.ne.s32.totalorder %s28, %s31
      %p37 = scmp.eq.s32.totalorder %s18, 0
      %p38 = por %p36, %p37
      %p39 = scmp.ne.s32.totalorder %s28, %s31
      %p40 = scmp.eq.s32.totalorder %s23, 1
      %p41 = por %p39, %p40
      %p42 = scmp.ne.s32.totalorder %s31, %s32
      %p43 = scmp.eq.s32.totalorder %s23, 0
      %p44 = por %p42, %p43
      %p45 = scmp.ne.s32.totalorder %s31, %s32
      %p46 = scmp.eq.s32.totalorder %s24, 1
      %p47 = por %p45, %p46
      %p49 = scmp.ne.s32.totalorder %s32, %s48
      %p50 = scmp.eq.s32.totalorder %s24, 0
      %p51 = por %p49, %p50
      %s53 = sadd.s32 %s52, 1
      %p56 = scmp.eq.s32.totalorder %s18, 1
      %p57 = scmp.ne.s32.totalorder %s52, %s54
      %p58 = scmp.eq.s32.totalorder %s18, 0
      %p59 = por %p57, %p58
      %p60 = scmp.ne.s32.totalorder %s52, %s54
      %p61 = scmp.eq.s32.totalorder %s23, 1
      %p62 = por %p60, %p61
      %p63 = scmp.ne.s32.totalorder %s54, %s55
      %p64 = scmp.eq.s32.totalorder %s23, 0
      %p65 = por %p63, %p64
      %p66 = scmp.ne.s32.totalorder %s54, %s55
      %p67 = scmp.eq.s32.totalorder %s24, 1
      %p68 = por %p66, %p67
      %p70 = scmp.ne.s32.totalorder %s55, %s69
      %p71 = scmp.eq.s32.totalorder %s24, 0
      %p72 = por %p70, %p71
      %s74 = sadd.s32 %s73, 1
      %p77 = scmp.eq.s32.totalorder %s18, 1
      %p78 = scmp.ne.s32.totalorder %s73, %s75
      %p79 = scmp.eq.s32.totalorder %s18, 0
      %p80 = por %p78, %p79
      %p81 = scmp.ne.s32.totalorder %s73, %s75
      %p82 = scmp.eq.s32.totalorder %s23, 1
      %p83 = por %p81, %p82
      %p84 = scmp.ne.s32.totalorder %s75, %s76
      %p85 = scmp.eq.s32.totalorder %s23, 0
      %p86 = por %p84, %p85
      %p87 = scmp.ne.s32.totalorder %s75, %s76
      %p88 = scmp.eq.s32.totalorder %s24, 1
      %p89 = por %p87, %p88
      %p91 = scmp.ne.s32.totalorder %s76, %s90
      %p92 = scmp.eq.s32.totalorder %s24, 0
      %p93 = por %p91, %p92
      %s95 = sadd.s32 %s94, 1
      %p98 = scmp.eq.s32.totalorder %s18, 1
      %p99 = scmp.ne.s32.totalorder %s94, %s96
      %p100 = scmp.eq.s32.totalorder %s18, 0
      %p101 = por %p99, %p100
      %p102 = scmp.ne.s32.totalorder %s94, %s96
      %p103 = scmp.eq.s32.totalorder %s23, 1
      %p104 = por %p102, %p103
      %p105 = scmp.ne.s32.totalorder %s96, %s97
      %p106 = scmp.eq.s32.totalorder %s23, 0
      %p107 = por %p105, %p106
      %p108 = scmp.ne.s32.totalorder %s96, %s97
      %p109 = scmp.eq.s32.totalorder %s24, 1
      %p110 = por %p108, %p109
      %p112 = scmp.ne.s32.totalorder %s97, %s111
      %p113 = scmp.eq.s32.totalorder %s24, 0
      %p114 = por %p112, %p113
      %s116 = sadd.s32 %s115, 1
      %p119 = scmp.eq.s32.totalorder %s18, 1
      %p120 = scmp.ne.s32.totalorder %s115, %s117
      %p121 = scmp.eq.s32.totalorder %s18, 0
      %p122 = por %p120, %p121
      %p123 = scmp.ne.s32.totalorder %s115, %s117
      %p124 = scmp.eq.s32.totalorder %s23, 1
      %p125 = por %p123, %p124
      %p126 = scmp.ne.s32.totalorder %s117, %s118
      %p127 = scmp.eq.s32.totalorder %s23, 0
      %p128 = por %p126, %p127
      %p129 = scmp.ne.s32.totalorder %s117, %s118
      %p130 = scmp.eq.s32.totalorder %s24, 1
      %p131 = por %p129, %p130
      %p133 = scmp.ne.s32.totalorder %s118, %s132
      %p134 = scmp.eq.s32.totalorder %s24, 0
      %p135 = por %p133, %p134
      %s137 = sadd.s32 %s136, 1
      %p140 = scmp.eq.s32.totalorder %s18, 1
      %p141 = scmp.ne.s32.totalorder %s136, %s138
      %p142 = scmp.eq.s32.totalorder %s18, 0
      %p143 = por %p141, %p142
      %p144 = scmp.ne.s32.totalorder %s136, %s138
      %p145 = scmp.eq.s32.totalorder %s23, 1
      %p146 = por %p144, %p145
      %p147 = scmp.ne.s32.totalorder %s138, %s139
      %p148 = scmp.eq.s32.totalorder %s23, 0
      %p149 = por %p147, %p148
      %p150 = scmp.ne.s32.totalorder %s138, %s139
      %p151 = scmp.eq.s32.totalorder %s24, 1
      %p152 = por %p150, %p151
      %p154 = scmp.ne.s32.totalorder %s139, %s153
      %p155 = scmp.eq.s32.totalorder %s24, 0
      %p156 = por %p154, %p155
      %s157 = ssub.s32 %s18, %s25
      %p158 = scmp.eq.s32.totalorder %s157, 0
      %s160 = sadd.s32 %s159, 1
      %s161 = scalar_select %p158, %s159, %s160
      %p164 = pneg %p158
      %p165 = scmp.eq.s32.totalorder %s18, 1
      %p166 = por %p164, %p165
      %p167 = scmp.ne.s32.totalorder %s159, %s162
      %p168 = scmp.eq.s32.totalorder %s18, 0
      %p169 = por %p167, %p168
      %p170 = scmp.ne.s32.totalorder %s159, %s162
      %p171 = scmp.eq.s32.totalorder %s23, 1
      %p172 = por %p170, %p171
      %p173 = scmp.ne.s32.totalorder %s162, %s163
      %p174 = scmp.eq.s32.totalorder %s23, 0
      %p175 = por %p173, %p174
      %p176 = scmp.ne.s32.totalorder %s162, %s163
      %p177 = scmp.eq.s32.totalorder %s24, 1
      %p178 = por %p176, %p177
      %p180 = scmp.ne.s32.totalorder %s163, %s179
      %p181 = scmp.eq.s32.totalorder %s24, 0
      %p182 = por %p180, %p181
      %p183 = scmp.le.s32.totalorder 1, %s18
      %p184 = scmp.lt.s32.totalorder %s18, 3
      %p185 = pnand %p183, %p184
      %p186 = pneg %p185
      // Predicated region
      $region9: #{tpu_custom_call.1} parent=5 // pred_check
        _
      $region10: #{tpu_custom_call.1} parent=5 // pred_check_branch
        %188 = sbr.rel (%p185) target = $region12
      $region11: #{tpu_custom_call.1} parent=5 // pred_region
        %s189 = ssub.s32 %s18, 1
        // Predicated region
        $region13: #{tpu_custom_call.1} parent=11 // pred_check
          %p190 = pneg %p65
        $region14: #{tpu_custom_call.1} parent=11 // pred_check_branch
          %192 = sbr.rel (%p190) target = $region16
        $region15: #{tpu_custom_call.1} parent=11 // pred_region
          _
        $region16: #{tpu_custom_call.1} parent=11 // pred_fallthru
          _
        // Predicated region
        $region17: #{tpu_custom_call.1} parent=11 // pred_check
          %p193 = pneg %p86
        $region18: #{tpu_custom_call.1} parent=11 // pred_check_branch
          %195 = sbr.rel (%p193) target = $region20
        $region19: #{tpu_custom_call.1} parent=11 // pred_region
          _
        $region20: #{tpu_custom_call.1} parent=11 // pred_fallthru
          _
        // Predicated region
        $region21: #{tpu_custom_call.1} parent=11 // pred_check
          %p196 = pneg %p107
        $region22: #{tpu_custom_call.1} parent=11 // pred_check_branch
          %198 = sbr.rel (%p196) target = $region24
        $region23: #{tpu_custom_call.1} parent=11 // pred_region
          _
        $region24: #{tpu_custom_call.1} parent=11 // pred_fallthru
          _
        // Predicated region
        $region25: #{tpu_custom_call.1} parent=11 // pred_check
          %p199 = pneg %p128
        $region26: #{tpu_custom_call.1} parent=11 // pred_check_branch
          %201 = sbr.rel (%p199) target = $region28
        $region27: #{tpu_custom_call.1} parent=11 // pred_region
          _
        $region28: #{tpu_custom_call.1} parent=11 // pred_fallthru
          _
        // Predicated region
        $region29: #{tpu_custom_call.1} parent=11 // pred_check
          %p202 = pneg %p149
        $region30: #{tpu_custom_call.1} parent=11 // pred_check_branch
          %204 = sbr.rel (%p202) target = $region32
        $region31: #{tpu_custom_call.1} parent=11 // pred_region
          _
        $region32: #{tpu_custom_call.1} parent=11 // pred_fallthru
          _
      $region12: #{tpu_custom_call.1} parent=5 // pred_fallthru
        _
      %p205 = scmp.lt.s32.totalorder %s18, 2
      // Predicated region
      $region33: #{tpu_custom_call.1} parent=5 // pred_check
        %p206 = pneg %p205
      $region34: #{tpu_custom_call.1} parent=5 // pred_check_branch
        %208 = sbr.rel (%p206) target = $region36
      $region35: #{tpu_custom_call.1} parent=5 // pred_region
        // Predicated region
        $region37: #{tpu_custom_call.1} parent=35 // pred_check
          %p209 = pneg %p38
        $region38: #{tpu_custom_call.1} parent=35 // pred_check_branch
          %211 = sbr.rel (%p209) target = $region40
        $region39: #{tpu_custom_call.1} parent=35 // pred_region
          %s212 = sand.u32 %s28, 1
          %s213 = scalar_lea.sflag [#allocation3], %s212
          %s214 = sand.u32 %s28, 1
          %s215 = smul.addr %s214, 8
          %s216 = scalar_lea.vmem [#allocation2], %s215
          %s218 = ssub.s32 128, 128
          %219 = vsyncadd %s213, %s218
          %s220 = smul.addr %s18, 2
          %s221 = smul.addr %s220, 64
          %s222 = scalar_lea.hbm %s0, %s221
          %s224 = sshll.u32 %s216, 4
          %s225 = int_to_ptr.vmem [resolvable:$true] %s224
          %227 = dma.hbm_to_vmem [thread:$0]  %s222, 128, %s225, %s213
        $region40: #{tpu_custom_call.1} parent=35 // pred_fallthru
          _
      $region36: #{tpu_custom_call.1} parent=5 // pred_fallthru
        _
      %p228 = scmp.le.s32.totalorder 1, %s18
      %p229 = scmp.lt.s32.totalorder %s18, 3
      %p230 = pnand %p228, %p229
      %p231 = pneg %p230
      // Predicated region
      $region41: #{tpu_custom_call.1} parent=5 // pred_check
        _
      $region42: #{tpu_custom_call.1} parent=5 // pred_check_branch
        %233 = sbr.rel (%p230) target = $region44
      $region43: #{tpu_custom_call.1} parent=5 // pred_region
        %s234 = ssub.s32 %s18, 1
        %s235 = sand.u32 %s31, 1
        %s236 = scalar_lea.sflag [#allocation3], %s235
        %s237 = sand.u32 %s31, 1
        %s238 = smul.addr %s237, 8
        %s239 = scalar_lea.vmem [#allocation2], %s238
        // Predicated region
        $region45: #{tpu_custom_call.1} parent=43 // pred_check
          %p240 = pneg %p44
        $region46: #{tpu_custom_call.1} parent=43 // pred_check_branch
          %242 = sbr.rel (%p240) target = $region48
        $region47: #{tpu_custom_call.1} parent=43 // pred_region
          %243 = dma.done %s236, 128
        $region48: #{tpu_custom_call.1} parent=43 // pred_fallthru
          _
        %s244 = sand.u32 %s31, 1
        %s245 = scalar_lea.sflag [#allocation3], %s244
        %s246 = sand.u32 %s31, 1
        %s247 = smul.addr %s246, 8
        %s248 = scalar_lea.vmem [#allocation2], %s247
        %p249 = pneg %p44
        %p250 = pneg %p41
        %p251 = pneg %p65
        %p252 = pneg %p62
        %p253 = pneg %p86
        %p254 = pneg %p83
        %p255 = pneg %p107
        %p256 = pneg %p104
        %p257 = pneg %p128
        %p258 = pneg %p125
        %p259 = pneg %p149
        %p260 = pneg %p146
        %p261 = pneg %p175
        %p262 = pneg %p172
        %s263 = sand.u32 %s162, 1
        %s264 = scalar_lea.sflag [#allocation4], %s263
        %s265 = sand.u32 %s162, 1
        %s266 = smul.addr %s265, 8
        %s267 = scalar_lea.vmem [#allocation5], %s266
        %v268 = vld [vmem:[%s239] sm:$0xff]
        %v269 = vld [vmem:[%s1] sm:$0x3]
        %v270 = vlaneseq
        %v271 = vshrl.u32 %v270, 7
        %v272 = vsub.s32 0, %v271
        %v273 = vrot.slane %v269, %v272
        %v274 = vlaneseq
        %v275 = vshrl.u32 %v274, 7
        %v276 = vsub.s32 1, %v275
        %v277 = vrot.slane %v269, %v276
        %vm278 = vcmp.eq.s32.totalorder %v273, 0
        %vm279 = vcmp.eq.s32.totalorder %v277, 0
        %vm280 = vcmp.eq.s32.totalorder %v273, 15
        %vm281 = vcmp.eq.s32.totalorder %v277, 15
        %v282 = vld [vmem:[%s2] sm:$0xf]
        %v283 = vld [vmem:[%s3] sm:$0xf]
        %285 = vrot.lane.b32.xlu0 %v268, 112
        %v286 = vpop.permute.xlu0 %285
        %v288 = vcombine.high %v268, %v268
        %289 = vrot.lane.b32.xlu0 %v268, 16
        %v290 = vpop.permute.xlu0 %289
        %291 = vrot.lane.b32.xlu0 %v288, 16
        %v292 = vpop.permute.xlu0 %291
        %vm293 = vcmask 130048
        %v294 = vsel %vm293, %v290, %v292
        %v297 = vsel %vm293, %v286, %v290
        %298 = vrot.lane.b32.xlu0 %v288, 112
        %v299 = vpop.permute.xlu0 %298
        %vm300 = vcmask 916480
        %v301 = vsel %vm300, %v286, %v299
        %v305 = vsel %vm300, %v299, %v292
        %307 = vrot.lane.b32.xlu0 %v297, 1
        %v308 = vpop.permute.xlu0 %307
        %309 = vrot.lane.b32.xlu0 %v294, 1
        %v310 = vpop.permute.xlu0 %309
        %vm311 = vcmask 7168
        %v312 = vsel %vm311, %v308, %v310
        %v315 = vsel %vm311, %v297, %v308
        %316 = vrot.lane.b32.xlu0 %v297, 127
        %v317 = vpop.permute.xlu0 %316
        %318 = vrot.lane.b32.xlu0 %v294, 127
        %v319 = vpop.permute.xlu0 %318
        %vm320 = vcmask 1039360
        %v321 = vsel %vm320, %v317, %v319
        %v324 = vsel %vm320, %v319, %v294
        %v325 = vsel %vm278, %v321, %v315
        %v326 = vsel %vm279, %v324, %v312
        %v327 = vsel %vm280, %v315, %v321
        %v328 = vsel %vm281, %v312, %v324
        %329 = vrot.lane.b32.xlu0 %v268, 1
        %v330 = vpop.permute.xlu0 %329
        %331 = vrot.lane.b32.xlu0 %v288, 1
        %v332 = vpop.permute.xlu0 %331
        %v333 = vsel %vm311, %v330, %v332
        %v336 = vsel %vm311, %v268, %v330
        %337 = vrot.lane.b32.xlu0 %v268, 127
        %v338 = vpop.permute.xlu0 %337
        %339 = vrot.lane.b32.xlu0 %v288, 127
        %v340 = vpop.permute.xlu0 %339
        %v341 = vsel %vm320, %v338, %v340
        %v345 = vsel %vm320, %v340, %v288
        %v346 = vsel %vm278, %v341, %v336
        %v347 = vsel %vm279, %v345, %v333
        %v348 = vsel %vm280, %v336, %v341
        %v349 = vsel %vm281, %v333, %v345
        %351 = vrot.lane.b32.xlu0 %v301, 1
        %v352 = vpop.permute.xlu0 %351
        %353 = vrot.lane.b32.xlu0 %v305, 1
        %v354 = vpop.permute.xlu0 %353
        %v355 = vsel %vm311, %v352, %v354
        %v358 = vsel %vm311, %v301, %v352
        %359 = vrot.lane.b32.xlu0 %v301, 127
        %v360 = vpop.permute.xlu0 %359
        %361 = vrot.lane.b32.xlu0 %v305, 127
        %v362 = vpop.permute.xlu0 %361
        %v363 = vsel %vm320, %v360, %v362
        %v366 = vsel %vm320, %v362, %v305
        %v367 = vsel %vm278, %v363, %v358
        %v368 = vsel %vm279, %v366, %v355
        %v369 = vsel %vm280, %v358, %v363
        %v370 = vsel %vm281, %v355, %v366
        %v371 = vrot.slane %v297, 4
        %v372 = vrot.slane %v294, 4
        %v377 = vrot.slane %v346, 4
        %v378 = vrot.slane %v347, 4
        %v383 = vrot.slane %v348, 4
        %v384 = vrot.slane %v349, 4
        %v387 = vrot.slane %v301, 4
        %v388 = vrot.slane %v305, 4
        %vm391 = vcmask 1043456
        %v392 = vsel %vm391, %v325, %v371
        %v393 = vsel %vm391, %v326, %v372
        %v394 = vsel %vm391, %v327, %v377
        %v395 = vsel %vm391, %v328, %v378
        %v396 = vsel %vm391, %v268, %v383
        %v397 = vsel %vm391, %v288, %v384
        %v398 = vsel %vm391, %v367, %v387
        %v399 = vsel %vm391, %v368, %v388
        %401 = vset.pattern.permute.xlu0 0
        %402 = vperm.xlu0 %401, %v283
        %v403 = vpop.permute.xlu0 %402
        %vm405 = vcmask 293888
        %v407 = vsel %vm405, %v282, 0
        %v410 = vsel %vm391, %v369, 0
        %v413 = vsel %vm391, %v370, 0
        %415 = vmatprep.subr.mxu0 0.0
        %416 = vmatpush1.msra.mxu0 0.0
        %417 = vmatprep.subr.mxu0 0.0
        %418 = vmatpush1.msra.mxu0 0.0
        %419 = vmatprep.subr.mxu0 0.0
        %420 = vmatpush1.msra.mxu0 0.0
        %421 = vmatprep.subr.mxu0 0.0
        %422 = vmatpush1.msra.mxu0 0.0
        %423 = vmatprep.subr.mxu0 0.0
        %424 = vmatpush1.msra.mxu0 0.0
        %425 = vmatprep.subr.mxu0 0.0
        %426 = vmatpush1.msra.mxu0 0.0
        %427 = vmatprep.subr.mxu0 0.0
        %428 = vmatpush1.msra.mxu0 0.0
        %429 = vmatprep.subr.mxu0 0.0
        %430 = vmatpush1.msra.mxu0 0.0
        %431 = vmatprep.subr.mxu0 0.0
        %432 = vmatpush1.msra.mxu0 0.0
        %433 = vmatprep.subr.mxu0 0.0
        %434 = vmatpush1.msra.mxu0 0.0
        %435 = vmatprep.subr.mxu0 0.0
        %436 = vmatpush1.msra.mxu0 0.0
        %437 = vmatprep.subr.mxu0 %v413
        %438 = vmatpush1.msra.mxu0 %v410
        %439 = vmatprep.subr.mxu0 %v399
        %440 = vmatpush1.msra.mxu0 %v398
        %441 = vmatprep.subr.mxu0 %v397
        %442 = vmatpush1.msra.mxu0 %v396
        %443 = vmatprep.subr.mxu0 %v395
        %444 = vmatpush1.msra.mxu0 %v394
        %445 = vmatprep.subr.mxu0 %v393
        %446 = vmatpush1.msra.mxu0 %v392
        %447 = vmatprep.subr.mxu0 0.0
        %448 = vmatpush2.msra.mxu0 0.0
        %449 = vmatprep.subr.mxu0 0.0
        %450 = vmatpush2.msra.mxu0 0.0
        %451 = vmatprep.subr.mxu0 0.0
        %452 = vmatpush2.msra.mxu0 0.0
        %453 = vmatprep.subr.mxu0 0.0
        %454 = vmatpush2.msra.mxu0 0.0
        %455 = vmatprep.subr.mxu0 0.0
        %456 = vmatpush2.msra.mxu0 0.0
        %457 = vmatprep.subr.mxu0 0.0
        %458 = vmatpush2.msra.mxu0 0.0
        %459 = vmatprep.subr.mxu0 0.0
        %460 = vmatpush2.msra.mxu0 0.0
        %461 = vmatprep.subr.mxu0 0.0
        %462 = vmatpush2.msra.mxu0 0.0
        %463 = vmatprep.subr.mxu0 0.0
        %464 = vmatpush2.msra.mxu0 0.0
        %465 = vmatprep.subr.mxu0 0.0
        %466 = vmatpush2.msra.mxu0 0.0
        %467 = vmatprep.subr.mxu0 0.0
        %468 = vmatpush2.msra.mxu0 0.0
        %469 = vmatprep.subr.mxu0 0.0
        %470 = vmatpush2.msra.mxu0 0.0
        %471 = vmatprep.subr.mxu0 0.0
        %472 = vmatpush2.msra.mxu0 0.0
        %473 = vmatprep.subr.mxu0 0.0
        %474 = vmatpush2.msra.mxu0 0.0
        %475 = vmatprep.subr.mxu0 0.0
        %476 = vmatpush2.msra.mxu0 0.0
        %477 = vmatprep.subr.mxu0 0.0
        %478 = vmatpush2.msra.mxu0 0.0
        %479 = vmatprep.mubr.f32.mxu0 0.0
        %480 = vmatmul.mubr.f32.gmra.mxu0 %v407
        %v481 = vpop.f32.mrf.mxu0
        %v482 = vadd.f32 %v403, %v481
        %v483 = vpop.f32.mrf.mxu0
        %v484 = vadd.f32 %v403, %v483
        %485 = vdwg.mxu0
        %v486 = vsel %vm391, %v482, 0.0
        %v487 = vsel %vm391, %v484, 0.0
        %v488 = vadd.f32 %v486, %v487
        %489 = vadd.xlane.f32.xlu0 %v488
        %v490 = vpop.xlane.xlu0 %489
        %v491 = vmul.f32 %v482, %v482
        %v492 = vmul.f32 %v484, %v484
        %v493 = vsel %vm391, %v491, 0.0
        %v494 = vsel %vm391, %v492, 0.0
        %v495 = vadd.f32 %v493, %v494
        %496 = vadd.xlane.f32.xlu0 %v495
        %v497 = vpop.xlane.xlu0 %496
        %v498 = vmul.f32 %v490, 0.00390625
        %v499 = vmul.f32 %v497, 0.00390625
        %v500 = vmul.f32 %v498, %v498
        %v501 = vsub.f32 %v499, %v500
        %v502 = vmax.f32 %v501, 0.0
        %v503 = vsub.f32 %v482, %v498
        %v504 = vsub.f32 %v484, %v498
        %v505 = vadd.f32 %v502, 1e-05
        %v506 = vrsqrt.pop %v505
        %v507 = vmul.f32 %v503, %v506
        %v508 = vmul.f32 %v504, %v506
        %v509 = vmax.f32 %v507, 0.0
        %v510 = vmax.f32 %v508, 0.0
        %v511 = vld [vmem:[%s4] sm:$0xf]
        %v512 = vld [vmem:[%s5] sm:$0xf]
        %514 = vrot.lane.b32.xlu0 %v509, 112
        %v515 = vpop.permute.xlu0 %514
        %518 = vrot.lane.b32.xlu0 %v509, 16
        %v519 = vpop.permute.xlu0 %518
        %520 = vrot.lane.b32.xlu0 %v510, 16
        %v521 = vpop.permute.xlu0 %520
        %v522 = vsel %vm293, %v519, %v521
        %v525 = vsel %vm293, %v515, %v519
        %526 = vrot.lane.b32.xlu0 %v510, 112
        %v527 = vpop.permute.xlu0 %526
        %v528 = vsel %vm300, %v515, %v527
        %v532 = vsel %vm300, %v527, %v521
        %534 = vrot.lane.b32.xlu0 %v525, 1
        %v535 = vpop.permute.xlu0 %534
        %536 = vrot.lane.b32.xlu0 %v522, 1
        %v537 = vpop.permute.xlu0 %536
        %v538 = vsel %vm311, %v535, %v537
        %v541 = vsel %vm311, %v525, %v535
        %542 = vrot.lane.b32.xlu0 %v525, 127
        %v543 = vpop.permute.xlu0 %542
        %544 = vrot.lane.b32.xlu0 %v522, 127
        %v545 = vpop.permute.xlu0 %544
        %v546 = vsel %vm320, %v543, %v545
        %v549 = vsel %vm320, %v545, %v522
        %v550 = vsel %vm278, %v546, %v541
        %v551 = vsel %vm279, %v549, %v538
        %v552 = vsel %vm280, %v541, %v546
        %v553 = vsel %vm281, %v538, %v549
        %554 = vrot.lane.b32.xlu0 %v509, 1
        %v555 = vpop.permute.xlu0 %554
        %556 = vrot.lane.b32.xlu0 %v510, 1
        %v557 = vpop.permute.xlu0 %556
        %v558 = vsel %vm311, %v555, %v557
        %v561 = vsel %vm311, %v509, %v555
        %562 = vrot.lane.b32.xlu0 %v509, 127
        %v563 = vpop.permute.xlu0 %562
        %564 = vrot.lane.b32.xlu0 %v510, 127
        %v565 = vpop.permute.xlu0 %564
        %v566 = vsel %vm320, %v563, %v565
        %v569 = vsel %vm320, %v565, %v510
        %v570 = vsel %vm278, %v566, %v561
        %v571 = vsel %vm279, %v569, %v558
        %v572 = vsel %vm280, %v561, %v566
        %v573 = vsel %vm281, %v558, %v569
        %575 = vrot.lane.b32.xlu0 %v528, 1
        %v576 = vpop.permute.xlu0 %575
        %577 = vrot.lane.b32.xlu0 %v532, 1
        %v578 = vpop.permute.xlu0 %577
        %v579 = vsel %vm311, %v576, %v578
        %v582 = vsel %vm311, %v528, %v576
        %583 = vrot.lane.b32.xlu0 %v528, 127
        %v584 = vpop.permute.xlu0 %583
        %585 = vrot.lane.b32.xlu0 %v532, 127
        %v586 = vpop.permute.xlu0 %585
        %v587 = vsel %vm320, %v584, %v586
        %v590 = vsel %vm320, %v586, %v532
        %v591 = vsel %vm278, %v587, %v582
        %v592 = vsel %vm279, %v590, %v579
        %v593 = vsel %vm280, %v582, %v587
        %v594 = vsel %vm281, %v579, %v590
        %v595 = vrot.slane %v525, 4
        %v596 = vrot.slane %v522, 4
        %v601 = vrot.slane %v570, 4
        %v602 = vrot.slane %v571, 4
        %v607 = vrot.slane %v572, 4
        %v608 = vrot.slane %v573, 4
        %v611 = vrot.slane %v528, 4
        %v612 = vrot.slane %v532, 4
        %v615 = vsel %vm391, %v550, %v595
        %v616 = vsel %vm391, %v551, %v596
        %v617 = vsel %vm391, %v552, %v601
        %v618 = vsel %vm391, %v553, %v602
        %v619 = vsel %vm391, %v509, %v607
        %v620 = vsel %vm391, %v510, %v608
        %v621 = vsel %vm391, %v591, %v611
        %v622 = vsel %vm391, %v592, %v612
        %624 = vset.pattern.permute.xlu0 0
        %625 = vperm.xlu0 %624, %v512
        %v626 = vpop.permute.xlu0 %625
        %v629 = vsel %vm405, %v511, 0
        %v632 = vsel %vm391, %v593, 0
        %v635 = vsel %vm391, %v594, 0
        %637 = vmatprep.subr.mxu0 0.0
        %638 = vmatpush1.msra.mxu0 0.0
        %639 = vmatprep.subr.mxu0 0.0
        %640 = vmatpush1.msra.mxu0 0.0
        %641 = vmatprep.subr.mxu0 0.0
        %642 = vmatpush1.msra.mxu0 0.0
        %643 = vmatprep.subr.mxu0 0.0
        %644 = vmatpush1.msra.mxu0 0.0
        %645 = vmatprep.subr.mxu0 0.0
        %646 = vmatpush1.msra.mxu0 0.0
        %647 = vmatprep.subr.mxu0 0.0
        %648 = vmatpush1.msra.mxu0 0.0
        %649 = vmatprep.subr.mxu0 0.0
        %650 = vmatpush1.msra.mxu0 0.0
        %651 = vmatprep.subr.mxu0 0.0
        %652 = vmatpush1.msra.mxu0 0.0
        %653 = vmatprep.subr.mxu0 0.0
        %654 = vmatpush1.msra.mxu0 0.0
        %655 = vmatprep.subr.mxu0 0.0
        %656 = vmatpush1.msra.mxu0 0.0
        %657 = vmatprep.subr.mxu0 0.0
        %658 = vmatpush1.msra.mxu0 0.0
        %659 = vmatprep.subr.mxu0 %v635
        %660 = vmatpush1.msra.mxu0 %v632
        %661 = vmatprep.subr.mxu0 %v622
        %662 = vmatpush1.msra.mxu0 %v621
        %663 = vmatprep.subr.mxu0 %v620
        %664 = vmatpush1.msra.mxu0 %v619
        %665 = vmatprep.subr.mxu0 %v618
        %666 = vmatpush1.msra.mxu0 %v617
        %667 = vmatprep.subr.mxu0 %v616
        %668 = vmatpush1.msra.mxu0 %v615
        %669 = vmatprep.subr.mxu0 0.0
        %670 = vmatpush2.msra.mxu0 0.0
        %671 = vmatprep.subr.mxu0 0.0
        %672 = vmatpush2.msra.mxu0 0.0
        %673 = vmatprep.subr.mxu0 0.0
        %674 = vmatpush2.msra.mxu0 0.0
        %675 = vmatprep.subr.mxu0 0.0
        %676 = vmatpush2.msra.mxu0 0.0
        %677 = vmatprep.subr.mxu0 0.0
        %678 = vmatpush2.msra.mxu0 0.0
        %679 = vmatprep.subr.mxu0 0.0
        %680 = vmatpush2.msra.mxu0 0.0
        %681 = vmatprep.subr.mxu0 0.0
        %682 = vmatpush2.msra.mxu0 0.0
        %683 = vmatprep.subr.mxu0 0.0
        %684 = vmatpush2.msra.mxu0 0.0
        %685 = vmatprep.subr.mxu0 0.0
        %686 = vmatpush2.msra.mxu0 0.0
        %687 = vmatprep.subr.mxu0 0.0
        %688 = vmatpush2.msra.mxu0 0.0
        %689 = vmatprep.subr.mxu0 0.0
        %690 = vmatpush2.msra.mxu0 0.0
        %691 = vmatprep.subr.mxu0 0.0
        %692 = vmatpush2.msra.mxu0 0.0
        %693 = vmatprep.subr.mxu0 0.0
        %694 = vmatpush2.msra.mxu0 0.0
        %695 = vmatprep.subr.mxu0 0.0
        %696 = vmatpush2.msra.mxu0 0.0
        %697 = vmatprep.subr.mxu0 0.0
        %698 = vmatpush2.msra.mxu0 0.0
        %699 = vmatprep.subr.mxu0 0.0
        %700 = vmatpush2.msra.mxu0 0.0
        %701 = vmatprep.mubr.f32.mxu0 0.0
        %702 = vmatmul.mubr.f32.gmra.mxu0 %v629
        %v703 = vpop.f32.mrf.mxu0
        %v704 = vadd.f32 %v626, %v703
        %v705 = vpop.f32.mrf.mxu0
        %v706 = vadd.f32 %v626, %v705
        %707 = vdwg.mxu0
        %v708 = vsel %vm391, %v704, 0.0
        %v709 = vsel %vm391, %v706, 0.0
        %v710 = vadd.f32 %v708, %v709
        %711 = vadd.xlane.f32.xlu0 %v710
        %v712 = vpop.xlane.xlu0 %711
        %v713 = vmul.f32 %v704, %v704
        %v714 = vmul.f32 %v706, %v706
        %v715 = vsel %vm391, %v713, 0.0
        %v716 = vsel %vm391, %v714, 0.0
        %v717 = vadd.f32 %v715, %v716
        %718 = vadd.xlane.f32.xlu0 %v717
        %v719 = vpop.xlane.xlu0 %718
        %v720 = vmul.f32 %v712, 0.00390625
        %v721 = vmul.f32 %v719, 0.00390625
        %v722 = vmul.f32 %v720, %v720
        %v723 = vsub.f32 %v721, %v722
        %v724 = vmax.f32 %v723, 0.0
        %v725 = vsub.f32 %v704, %v720
        %v726 = vsub.f32 %v706, %v720
        %v727 = vadd.f32 %v724, 1e-05
        %v728 = vrsqrt.pop %v727
        %v729 = vmul.f32 %v725, %v728
        %v730 = vmul.f32 %v726, %v728
        %v733 = vcombine.low %v729, %v730
        %v735 = vadd.f32 %v268, %v733
        %736 = vst [vmem:[%s267] sm:$0xff] %v735
        %s737 = sand.u32 %s162, 1
        %s738 = scalar_lea.sflag [#allocation4], %s737
        %s739 = sand.u32 %s162, 1
        %s740 = smul.addr %s739, 8
        %s741 = scalar_lea.vmem [#allocation5], %s740
        // Predicated region
        $region49: #{tpu_custom_call.1} parent=43 // pred_check
          %p742 = pneg %p172
        $region50: #{tpu_custom_call.1} parent=43 // pred_check_branch
          %744 = sbr.rel (%p742) target = $region52
        $region51: #{tpu_custom_call.1} parent=43 // pred_region
          %s746 = ssub.s32 128, 128
          %747 = vsyncadd %s738, %s746
          %s748 = smul.addr %s23, 2
          %s749 = smul.addr %s748, 64
          %s750 = scalar_lea.hbm %s6, %s749
          %s752 = sshll.u32 %s741, 4
          %s753 = int_to_ptr.vmem [resolvable:$true] %s752
          %755 = dma.vmem_to_hbm [thread:$0]  %s753, 128, %s750, %s738
        $region52: #{tpu_custom_call.1} parent=43 // pred_fallthru
          _
      $region44: #{tpu_custom_call.1} parent=5 // pred_fallthru
        _
      %p756 = scmp.le.s32.totalorder 2, %s18
      // Predicated region
      $region53: #{tpu_custom_call.1} parent=5 // pred_check
        %p757 = pneg %p756
      $region54: #{tpu_custom_call.1} parent=5 // pred_check_branch
        %759 = sbr.rel (%p757) target = $region56
      $region55: #{tpu_custom_call.1} parent=5 // pred_region
        %s760 = ssub.s32 %s18, 2
        // Predicated region
        $region57: #{tpu_custom_call.1} parent=55 // pred_check
          %p761 = pneg %p178
        $region58: #{tpu_custom_call.1} parent=55 // pred_check_branch
          %763 = sbr.rel (%p761) target = $region60
        $region59: #{tpu_custom_call.1} parent=55 // pred_region
          %s764 = sand.u32 %s163, 1
          %s765 = scalar_lea.sflag [#allocation4], %s764
          %s766 = sand.u32 %s163, 1
          %s767 = smul.addr %s766, 8
          %s768 = scalar_lea.vmem [#allocation5], %s767
          %769 = dma.done %s765, 128
        $region60: #{tpu_custom_call.1} parent=55 // pred_fallthru
          _
      $region56: #{tpu_custom_call.1} parent=5 // pred_fallthru
        _
    $region6: #{tpu_custom_call.1} parent=1 // loop_footer
      %s22 = sadd.s32 1, %s18
    $region7: #{tpu_custom_call.1} parent=1 // loop_footer_branch
      %17 = sbr.rel target = $region3
    $region8: #{tpu_custom_call.1} parent=1 // loop_exit
      _
    %770 = vsyncpa [#allocation3], 1
    %s771 = scalar_lea.sflag [#allocation3], 1
    %772 = vsyncpa %s771, 1
    %773 = vsyncpa [#allocation4], 1
    %s774 = scalar_lea.sflag [#allocation4], 1
    %775 = vsyncpa %s774, 1

</llo_original>
